<compile_context>
chip_gen: v7x
topology: tpu7x:2x2x1
jax: 0.10.0
libtpu: 0.0.40
codegen_flags: <defaults>
</compile_context>

<pallas_src>
import math

import jax
import jax.numpy as jnp
from jax.experimental import pallas as pl
from jax.experimental.pallas import tpu as pltpu


def _round_up(v, m):
    return ((v + m - 1) // m) * m


def _linear_bias_kernel(x_ref, w_ref, b_ref, o_ref, acc_ref):
    # x_ref: (bm, tk), w_ref: (tk, tn), b_ref: (1, tn),
    # o_ref: (bm, tn), acc_ref: (bm, tn) f32 scratch.
    k = pl.program_id(2)

    @pl.when(k == 0)
    def _init():
        # Fold the bias into the accumulator init (no separate epilogue add).
        acc_ref[...] = jnp.broadcast_to(
            b_ref[...].astype(jnp.float32), acc_ref.shape
        )

    acc_ref[...] += jnp.dot(
        x_ref[...], w_ref[...], preferred_element_type=jnp.float32
    )

    @pl.when(k == pl.num_programs(2) - 1)
    def _store():
        o_ref[...] = acc_ref[...].astype(o_ref.dtype)


def prepare_params(weight, bias, dtype=None):
    """One-time parameter prep (NOT per forward call).

    weight: (d_out, d_in) PyTorch nn.Linear layout; bias: (d_out,).
    Returns weight transposed to (d_in, d_out_padded) with d_out padded to a
    multiple of 128 lanes, and bias as a (1, d_out_padded) row.
    """
    weight = jnp.asarray(weight)
    bias = jnp.asarray(bias)
    if dtype is not None:
        weight = weight.astype(dtype)
        bias = bias.astype(dtype)
    d_out, d_in = weight.shape
    d_out_p = _round_up(max(d_out, 128), 128)
    w_t = jnp.transpose(weight)  # (d_in, d_out)
    if d_out_p != d_out:
        w_t = jnp.pad(w_t, ((0, 0), (0, d_out_p - d_out)))
        bias = jnp.pad(bias, (0, d_out_p - d_out))
    return {
        "weight_t": w_t,                       # (d_in, d_out_p)
        "bias_row": bias.reshape(1, d_out_p),  # (1, d_out_p)
        "d_out": d_out,
    }


def mlp_final_aux_forward(prepared, x):
    """y = x @ W^T + b over the last dim of x, output dtype == x.dtype."""
    w_t = prepared["weight_t"]
    b_row = prepared["bias_row"]
    d_out = prepared["d_out"]
    d_in, d_out_p = w_t.shape
    assert x.shape[-1] == d_in

    out_dtype = x.dtype
    lead = x.shape[:-1]
    x2 = x.reshape(-1, d_in)
    n = x2.shape[0]
    if n == 0:
        return jnp.zeros((*lead, d_out), out_dtype)

    # Match operand dtypes (no-op in the common case where params were prepared
    # in the compute dtype, e.g. bf16 params + bf16 activations).
    if w_t.dtype != x2.dtype:
        w_t = w_t.astype(x2.dtype)
    if b_row.dtype != x2.dtype and b_row.dtype != jnp.float32:
        b_row = b_row.astype(jnp.float32)

    # --- Tile selection ---
    # Rows: fixed tile; at least 2 row blocks once n >= 16 so the "parallel"
    # row axis can shard across v7x's two TensorCores. Ragged last block is
    # handled by Pallas (garbage pad rows never stored).
    BM_MAX = 256
    if n < 16:
        bm = n
    else:
        bm = min(BM_MAX, _round_up(pl.cdiv(n, 2), 8))
    # Output cols: multiple of 128 that divides d_out_p (d_out_p is 128-aligned).
    if d_out_p <= 512:
        tn = d_out_p
    elif d_out_p % 512 == 0:
        tn = 512
    elif d_out_p % 256 == 0:
        tn = 256
    else:
        tn = 128
    # K (d_in): only tile when large and evenly divisible (keeps reduction exact).
    if d_in > 512 and d_in % 512 == 0:
        tk = 512
    else:
        tk = d_in

    nrow = pl.cdiv(n, bm)
    ncol = d_out_p // tn
    nk = d_in // tk

    # VMEM budget: double-buffered in/out tiles + f32 accumulator, with headroom.
    isz = x2.dtype.itemsize
    osz = jnp.dtype(out_dtype).itemsize
    est = (2 * bm * tk * isz          # x tile (double-buffered)
           + 2 * tk * tn * isz        # weight tile
           + 2 * tn * 4               # bias row
           + 2 * bm * tn * osz        # output tile
           + bm * tn * 4)             # accumulator scratch
    vmem_limit = int(min(64 * 1024 * 1024, max(32 * 1024 * 1024, 2 * est)))

    out = pl.pallas_call(
        _linear_bias_kernel,
        grid_spec=pltpu.PrefetchScalarGridSpec(
            num_scalar_prefetch=0,
            grid=(nrow, ncol, nk),
            in_specs=[
                pl.BlockSpec((bm, tk), lambda i, j, k: (i, k)),    # x rows
                pl.BlockSpec((tk, tn), lambda i, j, k: (k, j)),    # W^T block
                pl.BlockSpec((1, tn), lambda i, j, k: (0, j)),     # bias row
            ],
            out_specs=pl.BlockSpec((bm, tn), lambda i, j, k: (i, j)),
            scratch_shapes=[pltpu.VMEM((bm, tn), jnp.float32)],
        ),
        out_shape=jax.ShapeDtypeStruct((n, d_out_p), out_dtype),
        compiler_params=pltpu.CompilerParams(
            dimension_semantics=("parallel", "parallel", "arbitrary"),
            vmem_limit_bytes=vmem_limit,
        ),
    )(x2, w_t, b_row)

    if d_out_p != d_out:
        out = out[:, :d_out]
    return out.reshape(*lead, d_out)


if __name__ == "__main__":
    # Small shapes consistent with the module: (batch, seq, d_model) input.
    B, S, d_model, d_model_above = 2, 8, 32, 64

    key = jax.random.PRNGKey(0)
    k_w, k_b, k_x = jax.random.split(key, 3)
    bound = 1.0 / math.sqrt(d_model)

    weight = jax.random.uniform(
        k_w, (d_model_above, d_model), jnp.float32, -bound, bound)
    bias = jax.random.uniform(
        k_b, (d_model_above,), jnp.float32, -bound, bound)
    x = jax.random.normal(k_x, (B, S, d_model), jnp.float32)

    prepared = prepare_params(weight, bias)          # one-time prep, not per call
    y = mlp_final_aux_forward(prepared, x)
    jax.block_until_ready(y)

    # Reference check against plain JAX (same math as PyTorch nn.Linear).
    y_ref = x @ weight.T + bias
    assert y.shape == (B, S, d_model_above)
    assert y.dtype == x.dtype
    assert jnp.allclose(y, y_ref, atol=1e-5, rtol=1e-5)

    print("KERNEL_OK")
</pallas_src>

<mosaic_0001>
module attributes {stable_mosaic.version = 11 : i64} {
  func.func @_linear_bias_kernel(%arg0: i32, %arg1: i32, %arg2: i32, %arg3: memref<8x32xf32, #tpu.memory_space<vmem>>, %arg4: memref<32x128xf32, #tpu.memory_space<vmem>>, %arg5: memref<1x128xf32, #tpu.memory_space<vmem>>, %arg6: memref<8x128xf32, #tpu.memory_space<vmem>>, %arg7: memref<8x128xf32, #tpu.memory_space<vmem>>) attributes {dimension_semantics = [#tpu.dimension_semantics<parallel>, #tpu.dimension_semantics<parallel>, #tpu.dimension_semantics<arbitrary>], iteration_bounds = array<i64: 2, 1, 1>, scalar_prefetch = 0 : i64, scratch_operands = 1 : i64, tpu.core_type = #tpu.core_type<tc>, window_params = [{transform_indices = @transform_0, window_bounds = array<i64: 8, 32>}, {transform_indices = @transform_1, window_bounds = array<i64: 32, 128>}, {transform_indices = @transform_2, window_bounds = array<i64: 1, 128>}, {transform_indices = @transform_3, window_bounds = array<i64: 8, 128>}]} {
    %c0_i32 = arith.constant 0 : i32
    %0 = arith.cmpi eq, %arg2, %c0_i32 : i32
    %1 = arith.extui %0 : i1 to i32
    %c0_i32_0 = arith.constant 0 : i32
    %2 = arith.cmpi ne, %1, %c0_i32_0 : i32
    scf.if %2 {
      %c0_10 = arith.constant 0 : index
      %c0_11 = arith.constant 0 : index
      %12 = vector.load %arg5[%c0_10, %c0_11] : memref<1x128xf32, #tpu.memory_space<vmem>>, vector<1x128xf32>
      %13 = vector.shape_cast %12 : vector<1x128xf32> to vector<1x128xf32>
      %14 = vector.broadcast %13 : vector<1x128xf32> to vector<8x128xf32>
      %c0_12 = arith.constant 0 : index
      %c0_13 = arith.constant 0 : index
      %15 = vector.load %arg7[%c0_12, %c0_13] : memref<8x128xf32, #tpu.memory_space<vmem>>, vector<8x128xf32>
      tpu.vector_store %arg7[%c0_12, %c0_13], %14 {strides = array<i32>} : memref<8x128xf32, #tpu.memory_space<vmem>>, vector<8x128xf32>,
    } else {
    }
    %c0 = arith.constant 0 : index
    %c0_1 = arith.constant 0 : index
    %3 = vector.load %arg7[%c0, %c0_1] : memref<8x128xf32, #tpu.memory_space<vmem>>, vector<8x128xf32>
    %c0_2 = arith.constant 0 : index
    %c0_3 = arith.constant 0 : index
    %4 = vector.load %arg3[%c0_2, %c0_3] : memref<8x32xf32, #tpu.memory_space<vmem>>, vector<8x32xf32>
    %c0_4 = arith.constant 0 : index
    %c0_5 = arith.constant 0 : index
    %5 = vector.load %arg4[%c0_4, %c0_5] : memref<32x128xf32, #tpu.memory_space<vmem>>, vector<32x128xf32>
    %cst = arith.constant dense<0.000000e+00> : vector<8x128xf32>
    %6 = tpu.matmul %4, %5, %cst {dimension_numbers = #tpu.dot_dimension_numbers<[1], [0], [0], [1], [0, 0, 1, 1], [], []>} : vector<8x32xf32>, vector<32x128xf32>, vector<8x128xf32> -> vector<8x128xf32>
    %7 = arith.addf %3, %6 : vector<8x128xf32>
    %c0_6 = arith.constant 0 : index
    %c0_7 = arith.constant 0 : index
    %8 = vector.load %arg7[%c0_6, %c0_7] : memref<8x128xf32, #tpu.memory_space<vmem>>, vector<8x128xf32>
    tpu.vector_store %arg7[%c0_6, %c0_7], %7 {strides = array<i32>} : memref<8x128xf32, #tpu.memory_space<vmem>>, vector<8x128xf32>,
    %c0_i32_8 = arith.constant 0 : i32
    %9 = arith.cmpi eq, %arg2, %c0_i32_8 : i32
    %10 = arith.extui %9 : i1 to i32
    %c0_i32_9 = arith.constant 0 : i32
    %11 = arith.cmpi ne, %10, %c0_i32_9 : i32
    scf.if %11 {
      %c0_10 = arith.constant 0 : index
      %c0_11 = arith.constant 0 : index
      %12 = vector.load %arg7[%c0_10, %c0_11] : memref<8x128xf32, #tpu.memory_space<vmem>>, vector<8x128xf32>
      %c0_12 = arith.constant 0 : index
      %c0_13 = arith.constant 0 : index
      %13 = vector.load %arg6[%c0_12, %c0_13] : memref<8x128xf32, #tpu.memory_space<vmem>>, vector<8x128xf32>
      tpu.vector_store %arg6[%c0_12, %c0_13], %12 {strides = array<i32>} : memref<8x128xf32, #tpu.memory_space<vmem>>, vector<8x128xf32>,
    } else {
    }
    return
  }
  func.func @transform_0(%arg0: i32, %arg1: i32, %arg2: i32) -> (i32, i32) {
    %c0_i32 = arith.constant 0 : i32
    return %arg0, %arg2 : i32, i32
  }
  func.func @transform_1(%arg0: i32, %arg1: i32, %arg2: i32) -> (i32, i32) {
    %c0_i32 = arith.constant 0 : i32
    return %arg2, %arg1 : i32, i32
  }
  func.func @transform_2(%arg0: i32, %arg1: i32, %arg2: i32) -> (i32, i32) {
    %c0_i32 = arith.constant 0 : i32
    %c0_i32_0 = arith.constant 0 : i32
    return %c0_i32, %arg1 : i32, i32
  }
  func.func @transform_3(%arg0: i32, %arg1: i32, %arg2: i32) -> (i32, i32) {
    %c0_i32 = arith.constant 0 : i32
    return %arg0, %arg1 : i32, i32
  }
}

</mosaic_0001>

<llo_original>
// kernel: tpu_custom_call.1
$region0: #{tpu_custom_call.1}
  #allocation0 [shape = 'u32[]', space=smem, size = 0x4, offset = 0x4, fixed_abs, tag = 'smem constant byte address 0x4 - core index']
  #allocation1 [shape = 'u32[144,128]{1,0:T(1,128)}', space=vmem, size = 0x12000, scoped, tag = 'internal scratch']
  #allocation2 [shape = 'f32[8,128]{1,0:T(8,128)}', space=vmem, size = 0x1000, scoped, tag = 'scratch operand']
  %s0 = inlined_call_operand.hbm [shape: f32[16,32], index: 0, kind: input, shape index: {}]
  %s1 = inlined_call_operand.hbm [shape: f32[32,128], index: 1, kind: input, shape index: {}]
  %s2 = inlined_call_operand.vmem [shape: f32[1,128], index: 2, kind: input, shape index: {}]
  %s3 = inlined_call_operand.hbm [shape: f32[16,128], index: 3, kind: output, shape index: {}]
  %s4 = sld [smem:[#allocation0]]
  $region61: #{tpu_custom_call.1} parent=0
    _
  %s6 = ssub.s32 1, %s4
  %s7 = scalar_select 0, %s6, %s4
  $region1: #{tpu_custom_call.1} parent=0
    #allocation3 [shape = 'u8[8192]{0}', space=vmem, size = 0x2000, scoped, tag = 'input window, operand 0']
    #allocation4 [shape = 's32[2]{0}', space=sflag, size = 0x8, scoped, tag = 'scoped memory for tpu_custom_call.1']
    #allocation5 [shape = 's32[2]{0}', space=sflag, size = 0x8, scoped, tag = 'scoped memory for tpu_custom_call.1']
    #allocation6 [shape = 'u8[16384]{0}', space=vmem, size = 0x4000, scoped, tag = 'input window, operand 1, single buffered']
    #allocation7 [shape = 's32[1]{0}', space=sflag, size = 0x4, scoped, tag = 'scoped memory for tpu_custom_call.1']
    #allocation8 [shape = 'u8[8192]{0}', space=vmem, size = 0x2000, scoped, tag = 'output window, operand 0']
    %8 = vsyncpa [#allocation4], 0
    %s9 = scalar_lea.sflag [#allocation4], 1
    %10 = vsyncpa %s9, 0
    %11 = vsyncpa [#allocation7], 0
    %12 = vsyncpa [#allocation5], 0
    %s13 = scalar_lea.sflag [#allocation5], 1
    %14 = vsyncpa %s13, 0
    loop: start=0, step=1, limit=4
    $region2: #{tpu_custom_call.1} parent=1 // loop_pre_header
      _
    $region3: #{tpu_custom_call.1} parent=1 // loop_header
      %s16 = sphi 0, %s20
      %p17 = scmp.ge.s32.totalorder %s16, 4
      %s23 = sphi 0, %s42
      %s24 = sphi 0, %s38
      %s25 = sphi 0, %s34
      %s26 = sphi 0, %s23
      %s27 = sphi 0, %s24
      %s28 = sphi 0, %s25
      %s29 = sphi 0, %s26
      %s30 = sphi 0, %s27
      %s31 = sphi 0, %s28
      %s47 = sphi 0, %s49
      %s50 = sphi 0, %s47
      %s51 = sphi 0, %s50
      %s67 = sphi 0, %s51
      %s75 = sphi 0, %s77
      %s78 = sphi 0, %s75
      %s79 = sphi 0, %s78
      %s95 = sphi 0, %s79
      %s101 = sphi 0, %s103
      %s104 = sphi 0, %s101
      %s105 = sphi 0, %s104
      %s121 = sphi 0, %s105
      %s129 = sphi 0, %s131
      %s132 = sphi 0, %s129
      %s133 = sphi 0, %s132
      %s149 = sphi 0, %s133
    $region4: #{tpu_custom_call.1} parent=1 // loop_header_branch
      %19 = sbr.rel (%p17) target = $region8
    $region5: #{tpu_custom_call.1} parent=1 // loop_body
      %s21 = ssub.s32 %s16, 1
      %s22 = ssub.s32 %s16, 2
      %s32 = sadd.s32 1, %s25
      %p33 = scmp.ge.s32.totalorder %s32, 1
      %s34 = scalar_select %p33, 0, %s32
      %s35 = sadd.s32 1, %s24
      %s36 = scalar_select %p33, %s35, %s24
      %p37 = scmp.ge.s32.totalorder %s36, 1
      %s38 = scalar_select %p37, 0, %s36
      %s39 = sadd.s32 1, %s23
      %s40 = scalar_select %p37, %s39, %s23
      %p41 = scmp.ge.s32.totalorder %s40, 2
      %s42 = scalar_select %p41, 0, %s40
      %s43 = ssub.s32 %s23, %s42
      %s44 = ssub.s32 %s25, %s34
      %s45 = sor.u32 %s43, %s44
      %p46 = scmp.eq.s32.totalorder %s45, 0
      %s48 = sadd.s32 %s47, 1
      %s49 = scalar_select %p46, %s47, %s48
      %p52 = pneg %p46
      %p53 = scmp.eq.s32.totalorder %s16, 1
      %p54 = por %p52, %p53
      %p55 = scmp.ne.s32.totalorder %s47, %s50
      %p56 = scmp.eq.s32.totalorder %s16, 0
      %p57 = por %p55, %p56
      %p58 = scmp.ne.s32.totalorder %s47, %s50
      %p59 = scmp.eq.s32.totalorder %s21, 1
      %p60 = por %p58, %p59
      %p61 = scmp.ne.s32.totalorder %s50, %s51
      %p62 = scmp.eq.s32.totalorder %s21, 0
      %p63 = por %p61, %p62
      %p64 = scmp.ne.s32.totalorder %s50, %s51
      %p65 = scmp.eq.s32.totalorder %s22, 1
      %p66 = por %p64, %p65
      %p68 = scmp.ne.s32.totalorder %s51, %s67
      %p69 = scmp.eq.s32.totalorder %s22, 0
      %p70 = por %p68, %p69
      %s71 = ssub.s32 %s25, %s34
      %s72 = ssub.s32 %s24, %s38
      %s73 = sor.u32 %s71, %s72
      %p74 = scmp.eq.s32.totalorder %s73, 0
      %s76 = sadd.s32 %s75, 1
      %s77 = scalar_select %p74, %s75, %s76
      %p80 = pneg %p74
      %p81 = scmp.eq.s32.totalorder %s16, 1
      %p82 = por %p80, %p81
      %p83 = scmp.ne.s32.totalorder %s75, %s78
      %p84 = scmp.eq.s32.totalorder %s16, 0
      %p85 = por %p83, %p84
      %p86 = scmp.ne.s32.totalorder %s75, %s78
      %p87 = scmp.eq.s32.totalorder %s21, 1
      %p88 = por %p86, %p87
      %p89 = scmp.ne.s32.totalorder %s78, %s79
      %p90 = scmp.eq.s32.totalorder %s21, 0
      %p91 = por %p89, %p90
      %p92 = scmp.ne.s32.totalorder %s78, %s79
      %p93 = scmp.eq.s32.totalorder %s22, 1
      %p94 = por %p92, %p93
      %p96 = scmp.ne.s32.totalorder %s79, %s95
      %p97 = scmp.eq.s32.totalorder %s22, 0
      %p98 = por %p96, %p97
      %s99 = ssub.s32 %s24, %s38
      %p100 = scmp.eq.s32.totalorder %s99, 0
      %s102 = sadd.s32 %s101, 1
      %s103 = scalar_select %p100, %s101, %s102
      %p106 = pneg %p100
      %p107 = scmp.eq.s32.totalorder %s16, 1
      %p108 = por %p106, %p107
      %p109 = scmp.ne.s32.totalorder %s101, %s104
      %p110 = scmp.eq.s32.totalorder %s16, 0
      %p111 = por %p109, %p110
      %p112 = scmp.ne.s32.totalorder %s101, %s104
      %p113 = scmp.eq.s32.totalorder %s21, 1
      %p114 = por %p112, %p113
      %p115 = scmp.ne.s32.totalorder %s104, %s105
      %p116 = scmp.eq.s32.totalorder %s21, 0
      %p117 = por %p115, %p116
      %p118 = scmp.ne.s32.totalorder %s104, %s105
      %p119 = scmp.eq.s32.totalorder %s22, 1
      %p120 = por %p118, %p119
      %p122 = scmp.ne.s32.totalorder %s105, %s121
      %p123 = scmp.eq.s32.totalorder %s22, 0
      %p124 = por %p122, %p123
      %s125 = ssub.s32 %s23, %s42
      %s126 = ssub.s32 %s24, %s38
      %s127 = sor.u32 %s125, %s126
      %p128 = scmp.eq.s32.totalorder %s127, 0
      %s130 = sadd.s32 %s129, 1
      %s131 = scalar_select %p128, %s129, %s130
      %p134 = pneg %p128
      %p135 = scmp.eq.s32.totalorder %s16, 1
      %p136 = por %p134, %p135
      %p137 = scmp.ne.s32.totalorder %s129, %s132
      %p138 = scmp.eq.s32.totalorder %s16, 0
      %p139 = por %p137, %p138
      %p140 = scmp.ne.s32.totalorder %s129, %s132
      %p141 = scmp.eq.s32.totalorder %s21, 1
      %p142 = por %p140, %p141
      %p143 = scmp.ne.s32.totalorder %s132, %s133
      %p144 = scmp.eq.s32.totalorder %s21, 0
      %p145 = por %p143, %p144
      %p146 = scmp.ne.s32.totalorder %s132, %s133
      %p147 = scmp.eq.s32.totalorder %s22, 1
      %p148 = por %p146, %p147
      %p150 = scmp.ne.s32.totalorder %s133, %s149
      %p151 = scmp.eq.s32.totalorder %s22, 0
      %p152 = por %p150, %p151
      %p153 = scmp.le.s32.totalorder 1, %s16
      %p154 = scmp.lt.s32.totalorder %s16, 3
      %p155 = pnand %p153, %p154
      %p156 = pneg %p155
      // Predicated region
      $region9: #{tpu_custom_call.1} parent=5 // pred_check
        _
      $region10: #{tpu_custom_call.1} parent=5 // pred_check_branch
        %158 = sbr.rel (%p155) target = $region12
      $region11: #{tpu_custom_call.1} parent=5 // pred_region
        %s159 = ssub.s32 %s16, 1
        // Predicated region
        $region13: #{tpu_custom_call.1} parent=11 // pred_check
          %p160 = pneg %p91
        $region14: #{tpu_custom_call.1} parent=11 // pred_check_branch
          %162 = sbr.rel (%p160) target = $region16
        $region15: #{tpu_custom_call.1} parent=11 // pred_region
          %s163 = smul.u32 4, %s28
          %s165 = ssub.s32 512, 512
          %166 = vsyncadd [#allocation7], %s165
          %s167 = sadd.s32 %s27, %s163
          %s168 = smul.addr %s167, 128
          %s169 = scalar_lea.hbm %s1, %s168
          %s170 = sshll.u32 [#allocation6], 4
          %s171 = int_to_ptr.vmem [resolvable:$true] %s170
          %176 = dma.hbm_to_vmem [thread:$0]  %s169, 512, %s171, [#allocation7], 128, 128, 8
        $region16: #{tpu_custom_call.1} parent=11 // pred_fallthru
          _
        // Predicated region
        $region17: #{tpu_custom_call.1} parent=11 // pred_check
          %p177 = pneg %p117
        $region18: #{tpu_custom_call.1} parent=11 // pred_check_branch
          %179 = sbr.rel (%p177) target = $region20
        $region19: #{tpu_custom_call.1} parent=11 // pred_region
          %p180 = scmp.lt.s32.totalorder %s27, 0
          %s181 = scalar_select %p180, %s27, 0
          %s182 = scalar_lea.vmem %s2, %s181
        $region20: #{tpu_custom_call.1} parent=11 // pred_fallthru
          _
      $region12: #{tpu_custom_call.1} parent=5 // pred_fallthru
        _
      %p183 = scmp.lt.s32.totalorder %s16, 2
      // Predicated region
      $region21: #{tpu_custom_call.1} parent=5 // pred_check
        %p184 = pneg %p183
      $region22: #{tpu_custom_call.1} parent=5 // pred_check_branch
        %186 = sbr.rel (%p184) target = $region24
      $region23: #{tpu_custom_call.1} parent=5 // pred_region
        // Predicated region
        $region25: #{tpu_custom_call.1} parent=23 // pred_check
          %p187 = pneg %p57
        $region26: #{tpu_custom_call.1} parent=23 // pred_check_branch
          %189 = sbr.rel (%p187) target = $region28
        $region27: #{tpu_custom_call.1} parent=23 // pred_region
          %s190 = sand.u32 %s47, 1
          %s191 = scalar_lea.sflag [#allocation4], %s190
          %s192 = sand.u32 %s47, 1
          %s193 = smul.addr %s192, 8
          %s194 = scalar_lea.vmem [#allocation3], %s193
          %s196 = ssub.s32 128, 128
          %197 = vsyncadd %s191, %s196
          %s198 = sadd.s32 %s25, %s23
          %s199 = smul.addr %s198, 128
          %s200 = scalar_lea.hbm %s0, %s199
          %s202 = sshll.u32 %s194, 4
          %s203 = int_to_ptr.vmem [resolvable:$true] %s202
          %205 = dma.hbm_to_vmem [thread:$0]  %s200, 128, %s203, %s191
        $region28: #{tpu_custom_call.1} parent=23 // pred_fallthru
          _
      $region24: #{tpu_custom_call.1} parent=5 // pred_fallthru
        _
      %p206 = scmp.le.s32.totalorder 1, %s16
      %p207 = scmp.lt.s32.totalorder %s16, 3
      %p208 = pnand %p206, %p207
      %p209 = pneg %p208
      // Predicated region
      $region29: #{tpu_custom_call.1} parent=5 // pred_check
        _
      $region30: #{tpu_custom_call.1} parent=5 // pred_check_branch
        %211 = sbr.rel (%p208) target = $region32
      $region31: #{tpu_custom_call.1} parent=5 // pred_region
        %s212 = ssub.s32 %s16, 1
        %s213 = sand.u32 %s50, 1
        %s214 = scalar_lea.sflag [#allocation4], %s213
        %s215 = sand.u32 %s50, 1
        %s216 = smul.addr %s215, 8
        %s217 = scalar_lea.vmem [#allocation3], %s216
        // Predicated region
        $region33: #{tpu_custom_call.1} parent=31 // pred_check
          %p218 = pneg %p63
        $region34: #{tpu_custom_call.1} parent=31 // pred_check_branch
          %220 = sbr.rel (%p218) target = $region36
        $region35: #{tpu_custom_call.1} parent=31 // pred_region
          %221 = dma.done %s214, 128
        $region36: #{tpu_custom_call.1} parent=31 // pred_fallthru
          _
        // Predicated region
        $region37: #{tpu_custom_call.1} parent=31 // pred_check
          %p222 = pneg %p91
        $region38: #{tpu_custom_call.1} parent=31 // pred_check_branch
          %224 = sbr.rel (%p222) target = $region40
        $region39: #{tpu_custom_call.1} parent=31 // pred_region
          %225 = dma.done [#allocation7], 512
        $region40: #{tpu_custom_call.1} parent=31 // pred_fallthru
          _
        %s226 = sand.u32 %s50, 1
        %s227 = scalar_lea.sflag [#allocation4], %s226
        %s228 = sand.u32 %s50, 1
        %s229 = smul.addr %s228, 8
        %s230 = scalar_lea.vmem [#allocation3], %s229
        %p231 = pneg %p63
        %p232 = pneg %p60
        %p233 = pneg %p91
        %p234 = pneg %p88
        %p235 = scmp.lt.s32.totalorder %s27, 0
        %s236 = scalar_select %p235, %s27, 0
        %s237 = scalar_lea.vmem %s2, %s236
        %p238 = pneg %p117
        %p239 = pneg %p114
        %p240 = pneg %p145
        %p241 = pneg %p142
        %s242 = sand.u32 %s132, 1
        %s243 = scalar_lea.sflag [#allocation5], %s242
        %s244 = sand.u32 %s132, 1
        %s245 = smul.addr %s244, 8
        %s246 = scalar_lea.vmem [#allocation8], %s245
        %s247 = smul.u32 4, %s28
        %p248 = scmp.lt.s32.totalorder %s27, 0
        %s249 = scalar_select %p248, %s27, 0
        %s250 = scalar_lea.vmem %s2, %s249
        %p251 = scmp.eq.s32.totalorder %s28, 0
        // Predicated region
        $region41: #{tpu_custom_call.1} parent=31 // pred_check
          %p252 = pneg %p251
        $region42: #{tpu_custom_call.1} parent=31 // pred_check_branch
          %254 = sbr.rel (%p252) target = $region44
        $region43: #{tpu_custom_call.1} parent=31 // pred_region
          %v255 = vld [vmem:[%s250] sm:$0x1]
          %v257 = vlaneseq
          %v258 = vshrl.u32 %v257, 7
          %v259 = vsub.s32 0, %v258
          %v260 = vrot.slane %v255, %v259
          %262 = vst [vmem:[#allocation2] sm:$0xff] %v260
        $region44: #{tpu_custom_call.1} parent=31 // pred_fallthru
          _
        %v263 = vld [vmem:[#allocation2] sm:$0xff]
        %v264 = vld [vmem:[%s217] sm:$0xff]
        %v265 = vld [vmem:[#allocation6] sm:$0xff]
        %v266 = vld [vmem:[#allocation6 + $0x8] sm:$0xff]
        %v267 = vld [vmem:[#allocation6 + $0x10] sm:$0xff]
        %v268 = vld [vmem:[#allocation6 + $0x18] sm:$0xff]
        %vm269 = vcmask 261120
        %v271 = vsel %vm269, %v264, 0
        %273 = vmatprep.subr.mxu0 0.0
        %274 = vmatpush1.msra.mxu0 %v265
        %275 = vmatprep.subr.mxu0 0.0
        %276 = vmatpush1.msra.mxu0 %v266
        %277 = vmatprep.subr.mxu0 0.0
        %278 = vmatpush1.msra.mxu0 %v267
        %279 = vmatprep.subr.mxu0 0.0
        %280 = vmatpush1.msra.mxu0 %v268
        %281 = vmatprep.subr.mxu0 0.0
        %282 = vmatpush1.msra.mxu0 0.0
        %283 = vmatprep.subr.mxu0 0.0
        %284 = vmatpush1.msra.mxu0 0.0
        %285 = vmatprep.subr.mxu0 0.0
        %286 = vmatpush1.msra.mxu0 0.0
        %287 = vmatprep.subr.mxu0 0.0
        %288 = vmatpush1.msra.mxu0 0.0
        %289 = vmatprep.subr.mxu0 0.0
        %290 = vmatpush1.msra.mxu0 0.0
        %291 = vmatprep.subr.mxu0 0.0
        %292 = vmatpush1.msra.mxu0 0.0
        %293 = vmatprep.subr.mxu0 0.0
        %294 = vmatpush1.msra.mxu0 0.0
        %295 = vmatprep.subr.mxu0 0.0
        %296 = vmatpush1.msra.mxu0 0.0
        %297 = vmatprep.subr.mxu0 0.0
        %298 = vmatpush1.msra.mxu0 0.0
        %299 = vmatprep.subr.mxu0 0.0
        %300 = vmatpush1.msra.mxu0 0.0
        %301 = vmatprep.subr.mxu0 0.0
        %302 = vmatpush1.msra.mxu0 0.0
        %303 = vmatprep.subr.mxu0 0.0
        %304 = vmatpush1.msra.mxu0 0.0
        %305 = vmatprep.subr.mxu0 0.0
        %306 = vmatpush1.msra.mxu0 0.0
        %307 = vmatprep.subr.mxu0 0.0
        %308 = vmatpush1.msra.mxu0 0.0
        %309 = vmatprep.subr.mxu0 0.0
        %310 = vmatpush1.msra.mxu0 0.0
        %311 = vmatprep.subr.mxu0 0.0
        %312 = vmatpush1.msra.mxu0 0.0
        %313 = vmatprep.subr.mxu0 0.0
        %314 = vmatpush1.msra.mxu0 0.0
        %315 = vmatprep.subr.mxu0 0.0
        %316 = vmatpush1.msra.mxu0 0.0
        %317 = vmatprep.subr.mxu0 0.0
        %318 = vmatpush1.msra.mxu0 0.0
        %319 = vmatprep.subr.mxu0 0.0
        %320 = vmatpush1.msra.mxu0 0.0
        %321 = vmatprep.subr.mxu0 0.0
        %322 = vmatpush1.msra.mxu0 0.0
        %323 = vmatprep.subr.mxu0 0.0
        %324 = vmatpush1.msra.mxu0 0.0
        %325 = vmatprep.subr.mxu0 0.0
        %326 = vmatpush1.msra.mxu0 0.0
        %327 = vmatprep.subr.mxu0 0.0
        %328 = vmatpush1.msra.mxu0 0.0
        %329 = vmatprep.subr.mxu0 0.0
        %330 = vmatpush1.msra.mxu0 0.0
        %331 = vmatprep.subr.mxu0 0.0
        %332 = vmatpush1.msra.mxu0 0.0
        %333 = vmatprep.subr.mxu0 0.0
        %334 = vmatpush1.msra.mxu0 0.0
        %335 = vmatprep.subr.mxu0 0.0
        %336 = vmatpush1.msra.mxu0 0.0
        %337 = vmatprep.mubr.f32.mxu0 0.0
        %338 = vmatmul.mubr.f32.gmra.mrb[0].mxu0 %v271
        %v339 = vpop.f32.mrb[0].mxu0
        %v340 = vadd.f32 0.0, %v339
        %v341 = vpop.f32.mrb[0].mxu0
        %342 = vdwg.mxu0
        %v343 = vadd.f32 %v263, %v340
        %344 = vst [vmem:[#allocation2] sm:$0xff] %v343
        // Predicated region
        $region45: #{tpu_custom_call.1} parent=31 // pred_check
          %p345 = pneg %p251
        $region46: #{tpu_custom_call.1} parent=31 // pred_check_branch
          %347 = sbr.rel (%p345) target = $region48
        $region47: #{tpu_custom_call.1} parent=31 // pred_region
          %v348 = vld [vmem:[#allocation2] sm:$0xff]
          %349 = vst [vmem:[%s246] sm:$0xff] %v348
        $region48: #{tpu_custom_call.1} parent=31 // pred_fallthru
          _
        %s350 = sand.u32 %s132, 1
        %s351 = scalar_lea.sflag [#allocation5], %s350
        %s352 = sand.u32 %s132, 1
        %s353 = smul.addr %s352, 8
        %s354 = scalar_lea.vmem [#allocation8], %s353
        // Predicated region
        $region49: #{tpu_custom_call.1} parent=31 // pred_check
          %p355 = pneg %p142
        $region50: #{tpu_custom_call.1} parent=31 // pred_check_branch
          %357 = sbr.rel (%p355) target = $region52
        $region51: #{tpu_custom_call.1} parent=31 // pred_region
          %s359 = ssub.s32 128, 128
          %360 = vsyncadd %s351, %s359
          %s361 = sadd.s32 %s27, %s26
          %s362 = smul.addr %s361, 128
          %s363 = scalar_lea.hbm %s3, %s362
          %s365 = sshll.u32 %s354, 4
          %s366 = int_to_ptr.vmem [resolvable:$true] %s365
          %368 = dma.vmem_to_hbm [thread:$0]  %s366, 128, %s363, %s351
        $region52: #{tpu_custom_call.1} parent=31 // pred_fallthru
          _
      $region32: #{tpu_custom_call.1} parent=5 // pred_fallthru
        _
      %p369 = scmp.le.s32.totalorder 2, %s16
      // Predicated region
      $region53: #{tpu_custom_call.1} parent=5 // pred_check
        %p370 = pneg %p369
      $region54: #{tpu_custom_call.1} parent=5 // pred_check_branch
        %372 = sbr.rel (%p370) target = $region56
      $region55: #{tpu_custom_call.1} parent=5 // pred_region
        %s373 = ssub.s32 %s16, 2
        // Predicated region
        $region57: #{tpu_custom_call.1} parent=55 // pred_check
          %p374 = pneg %p148
        $region58: #{tpu_custom_call.1} parent=55 // pred_check_branch
          %376 = sbr.rel (%p374) target = $region60
        $region59: #{tpu_custom_call.1} parent=55 // pred_region
          %s377 = sand.u32 %s133, 1
          %s378 = scalar_lea.sflag [#allocation5], %s377
          %s379 = sand.u32 %s133, 1
          %s380 = smul.addr %s379, 8
          %s381 = scalar_lea.vmem [#allocation8], %s380
          %382 = dma.done %s378, 128
        $region60: #{tpu_custom_call.1} parent=55 // pred_fallthru
          _
      $region56: #{tpu_custom_call.1} parent=5 // pred_fallthru
        _
    $region6: #{tpu_custom_call.1} parent=1 // loop_footer
      %s20 = sadd.s32 1, %s16
    $region7: #{tpu_custom_call.1} parent=1 // loop_footer_branch
      %15 = sbr.rel target = $region3
    $region8: #{tpu_custom_call.1} parent=1 // loop_exit
      _
    %383 = vsyncpa [#allocation4], 1
    %s384 = scalar_lea.sflag [#allocation4], 1
    %385 = vsyncpa %s384, 1
    %386 = vsyncpa [#allocation7], 1
    %387 = vsyncpa [#allocation5], 1
    %s388 = scalar_lea.sflag [#allocation5], 1
    %389 = vsyncpa %s388, 1

</llo_original>
